<compile_context>
chip_gen: v5e
topology: v5e:2x2
jax: 0.10.0
libtpu: 0.0.40
codegen_flags: <defaults>
</compile_context>

<pallas_src>
import functools

import jax
import jax.numpy as jnp
from jax.experimental import pallas as pl
from jax.experimental.pallas import tpu as pltpu


def _seq_encoder_kernel(ids_ref, emb_row_ref, out_ref, *, seq_len):
    """Grid = (batch, seq); seq is the reduction axis.

    ids_ref     : (B*S,) int32 token ids in SMEM (scalar prefetch; consumed by
                  the index_maps, unused in the body)
    emb_row_ref : (1, 1, E) gathered embedding row for token (b, s)
    out_ref     : (1, 1, E) f32 output block, resident across the seq axis
    """
    del ids_ref  # only needed by the index_maps
    s = pl.program_id(1)

    @pl.when(s == 0)
    def _init():
        out_ref[...] = jnp.zeros_like(out_ref)

    # Mean-pool accumulate on the VPU, directly into the f32 output block.
    out_ref[...] += emb_row_ref[...].astype(jnp.float32)

    @pl.when(s == seq_len - 1)
    def _finalize():
        out_ref[...] *= jnp.float32(1.0 / seq_len)


def seq_encoder_forward(inputs, embedding, *, training=False):
    """inputs: (B, S) int token ids; embedding: (V, E). Returns (B, E) f32."""
    if training:
        # TODO(synk): F.dropout(p=0.25, training=True) (stochastic per-element
        # mask + 1/(1-p) rescale) is not implemented; eval-mode forward only.
        raise NotImplementedError("training-mode dropout not implemented")

    B, S = inputs.shape
    V, E = embedding.shape

    ids = inputs.reshape(B * S).astype(jnp.int32)   # 1-D -> minimal SMEM padding
    emb3 = embedding.reshape(V, 1, E)               # free view; blocks are (1, 1, E)

    itemsize = jnp.dtype(embedding.dtype).itemsize
    row_bytes = E * itemsize
    out_row_bytes = E * 4

    # VMEM used per grid step: double-buffered gathered row + resident output
    # block (+ writeback buffer).  Generous headroom, capped well under v7x's
    # 64 MiB physical VMEM.
    vmem_limit = int(min(max(8 * (2 * row_bytes + 2 * out_row_bytes) + (1 << 20),
                             4 << 20),
                         64 << 20))

    cost = pl.CostEstimate(
        flops=B * S * E + B * E,                    # per-token adds + final scale
        transcendentals=0,
        bytes_accessed=B * S * row_bytes + B * S * 4 + B * out_row_bytes,
    )

    out = pl.pallas_call(
        functools.partial(_seq_encoder_kernel, seq_len=S),
        out_shape=jax.ShapeDtypeStruct((B, 1, E), jnp.float32),
        grid_spec=pltpu.PrefetchScalarGridSpec(
            num_scalar_prefetch=1,
            grid=(B, S),
            in_specs=[
                # Data-dependent row gather: block index along V is the token
                # id itself (block size 1 => block index == row index).
                pl.BlockSpec((1, 1, E),
                             lambda b, s, ids_ref: (ids_ref[b * S + s], 0, 0)),
            ],
            out_specs=pl.BlockSpec((1, 1, E),
                                   lambda b, s, ids_ref: (b, 0, 0)),
        ),
        compiler_params=pltpu.CompilerParams(
            dimension_semantics=("parallel", "arbitrary"),
            vmem_limit_bytes=vmem_limit,
        ),
        cost_estimate=cost,
    )(ids, emb3)

    return out.reshape(B, E)


def init_embedding(key, vocab_size, emb_size):
    """nn.init.uniform_(-0.1, 0.1); row 0 zeroed (padding token)."""
    w = jax.random.uniform(key, (vocab_size, emb_size),
                           minval=-0.1, maxval=0.1, dtype=jnp.float32)
    w = w.at[0].set(0.0)
    return w


if __name__ == "__main__":
    # Small shapes consistent with the module: vocab=64, emb=hidden=32, B=2, S=8.
    vocab_size, emb_size = 64, 32
    batch, seq_len = 2, 8

    key = jax.random.PRNGKey(0)
    k_emb, k_idx = jax.random.split(key)

    embedding = init_embedding(k_emb, vocab_size, emb_size)
    inputs = jax.random.randint(k_idx, (batch, seq_len), 0, vocab_size,
                                dtype=jnp.int32)

    out = seq_encoder_forward(inputs, embedding)
    out = jax.block_until_ready(out)

    # Pure-JAX reference (eval-mode forward).
    ref = jnp.sum(embedding[inputs], axis=1) / seq_len
    assert out.shape == (batch, emb_size)
    assert jnp.allclose(out, ref, atol=1e-5, rtol=1e-5)

    print("KERNEL_OK")
</pallas_src>

<mosaic_0001>
module attributes {stable_mosaic.version = 11 : i64} {
  func.func @_seq_encoder_kernel(%arg0: i32, %arg1: i32, %arg2: memref<16xi32, #tpu.memory_space<smem>>, %arg3: memref<1x1x32xf32, #tpu.memory_space<vmem>>, %arg4: memref<1x1x32xf32, #tpu.memory_space<vmem>>) attributes {dimension_semantics = [#tpu.dimension_semantics<parallel>, #tpu.dimension_semantics<arbitrary>], iteration_bounds = array<i64: 2, 8>, scalar_prefetch = 1 : i64, scratch_operands = 0 : i64, tpu.core_type = #tpu.core_type<tc>, window_params = [{transform_indices = @transform_0, window_bounds = array<i64: 1, 1, 32>}, {transform_indices = @transform_1, window_bounds = array<i64: 1, 1, 32>}]} {
    %c0_i32 = arith.constant 0 : i32
    %0 = arith.cmpi eq, %arg1, %c0_i32 : i32
    %1 = arith.extui %0 : i1 to i32
    %c0_i32_0 = arith.constant 0 : i32
    %2 = arith.cmpi ne, %1, %c0_i32_0 : i32
    scf.if %2 {
      %cst = arith.constant 0.000000e+00 : f32
      %10 = vector.broadcast %cst : f32 to vector<1x1x32xf32>
      %c0_10 = arith.constant 0 : index
      %c0_11 = arith.constant 0 : index
      %c0_12 = arith.constant 0 : index
      %11 = vector.load %arg4[%c0_10, %c0_11, %c0_12] : memref<1x1x32xf32, #tpu.memory_space<vmem>>, vector<1x1x32xf32>
      tpu.vector_store %arg4[%c0_10, %c0_11, %c0_12], %10 {strides = array<i32>} : memref<1x1x32xf32, #tpu.memory_space<vmem>>, vector<1x1x32xf32>,
    } else {
    }
    %c0 = arith.constant 0 : index
    %c0_1 = arith.constant 0 : index
    %c0_2 = arith.constant 0 : index
    %3 = vector.load %arg4[%c0, %c0_1, %c0_2] : memref<1x1x32xf32, #tpu.memory_space<vmem>>, vector<1x1x32xf32>
    %c0_3 = arith.constant 0 : index
    %c0_4 = arith.constant 0 : index
    %c0_5 = arith.constant 0 : index
    %4 = vector.load %arg3[%c0_3, %c0_4, %c0_5] : memref<1x1x32xf32, #tpu.memory_space<vmem>>, vector<1x1x32xf32>
    %5 = arith.addf %3, %4 : vector<1x1x32xf32>
    %c0_6 = arith.constant 0 : index
    %c0_7 = arith.constant 0 : index
    %c0_8 = arith.constant 0 : index
    %6 = vector.load %arg4[%c0_6, %c0_7, %c0_8] : memref<1x1x32xf32, #tpu.memory_space<vmem>>, vector<1x1x32xf32>
    tpu.vector_store %arg4[%c0_6, %c0_7, %c0_8], %5 {strides = array<i32>} : memref<1x1x32xf32, #tpu.memory_space<vmem>>, vector<1x1x32xf32>,
    %c7_i32 = arith.constant 7 : i32
    %7 = arith.cmpi eq, %arg1, %c7_i32 : i32
    %8 = arith.extui %7 : i1 to i32
    %c0_i32_9 = arith.constant 0 : i32
    %9 = arith.cmpi ne, %8, %c0_i32_9 : i32
    scf.if %9 {
      %c0_10 = arith.constant 0 : index
      %c0_11 = arith.constant 0 : index
      %c0_12 = arith.constant 0 : index
      %10 = vector.load %arg4[%c0_10, %c0_11, %c0_12] : memref<1x1x32xf32, #tpu.memory_space<vmem>>, vector<1x1x32xf32>
      %cst = arith.constant 1.250000e-01 : f32
      %11 = vector.broadcast %cst : f32 to vector<1x1x32xf32>
      %12 = arith.mulf %10, %11 : vector<1x1x32xf32>
      %c0_13 = arith.constant 0 : index
      %c0_14 = arith.constant 0 : index
      %c0_15 = arith.constant 0 : index
      %13 = vector.load %arg4[%c0_13, %c0_14, %c0_15] : memref<1x1x32xf32, #tpu.memory_space<vmem>>, vector<1x1x32xf32>
      tpu.vector_store %arg4[%c0_13, %c0_14, %c0_15], %12 {strides = array<i32>} : memref<1x1x32xf32, #tpu.memory_space<vmem>>, vector<1x1x32xf32>,
    } else {
    }
    return
  }
  func.func @transform_0(%arg0: i32, %arg1: i32, %arg2: memref<16xi32, #tpu.memory_space<smem>>) -> (i32, i32, i32) {
    %c8_i32 = arith.constant 8 : i32
    %0 = arith.muli %arg0, %c8_i32 : i32
    %1 = arith.addi %0, %arg1 : i32
    %2 = arith.index_cast %1 : i32 to index
    %3 = memref.load %arg2[%2] : memref<16xi32, #tpu.memory_space<smem>>
    %c0_i32 = arith.constant 0 : i32
    %c0_i32_0 = arith.constant 0 : i32
    %c0_i32_1 = arith.constant 0 : i32
    return %3, %c0_i32, %c0_i32_0 : i32, i32, i32
  }
  func.func @transform_1(%arg0: i32, %arg1: i32, %arg2: memref<16xi32, #tpu.memory_space<smem>>) -> (i32, i32, i32) {
    %c0_i32 = arith.constant 0 : i32
    %c0_i32_0 = arith.constant 0 : i32
    %c0_i32_1 = arith.constant 0 : i32
    return %arg0, %c0_i32, %c0_i32_0 : i32, i32, i32
  }
}

</mosaic_0001>

<llo_original>
// kernel: tpu_custom_call.1
$region0: #{tpu_custom_call.1}
  #allocation0 [shape = 'u32[]', space=smem, size = 0x4, offset = 0x4, fixed_abs, tag = 'smem constant byte address 0x4 - core index']
  #allocation1 [shape = 'u32[72,128]{1,0:T(1,128)}', space=vmem, size = 0x9000, scoped, tag = 'internal scratch']
  #allocation2 [shape = 's32[1]{0}', space=sflag, size = 0x4, scoped, tag = 'scoped memory for tpu_custom_call.1']
  #allocation3 [shape = 'u8[512]{0}', space=smem, size = 0x200, scoped, tag = 'prefetched SMEM operand 0']
  %s0 = inlined_call_operand.vmem [shape: s32[16], index: 0, kind: input, shape index: {}]
  %s1 = inlined_call_operand.vmem [shape: f32[64,1,32], index: 1, kind: input, shape index: {}]
  %s2 = inlined_call_operand.hbm [shape: f32[2,1,32], index: 2, kind: output, shape index: {}]
  %s3 = sld [smem:[#allocation0]]
  $region45: #{tpu_custom_call.1} parent=0
    _
  %s5 = ssub.s32 1, %s3
  %s6 = scalar_select 0, %s5, %s3
  %s8 = sshll.u32 %s0, 4
  %s9 = int_to_ptr.vmem [resolvable:$true] %s8
  %11 = dma.vmem_to_smem %s9, 16, [#allocation3], [#allocation2]
  %13 = dma.done [#allocation2], 16
  %14 = sfence
  $region1: #{tpu_custom_call.1} parent=0
    #allocation4 [shape = 'u8[1024]{0}', space=vmem, size = 0x400, scoped, tag = 'output window, operand 0']
    #allocation5 [shape = 's32[2]{0}', space=sflag, size = 0x8, scoped, tag = 'scoped memory for tpu_custom_call.1']
    %15 = vsyncpa [#allocation5], 0
    %s16 = scalar_lea.sflag [#allocation5], 1
    %17 = vsyncpa %s16, 0
    loop: start=0, step=1, limit=18
    $region2: #{tpu_custom_call.1} parent=1 // loop_pre_header
      _
    $region3: #{tpu_custom_call.1} parent=1 // loop_header
      %s19 = sphi 0, %s23
      %p20 = scmp.ge.s32.totalorder %s19, 18
      %s26 = sphi 0, %s38
      %s27 = sphi 0, %s34
      %s28 = sphi 0, %s26
      %s29 = sphi 0, %s27
      %s30 = sphi 0, %s28
      %s31 = sphi 0, %s29
      %s47 = sphi 0, %s49
      %s50 = sphi 0, %s47
      %s51 = sphi 0, %s50
      %s67 = sphi 0, %s51
      %s73 = sphi 0, %s75
      %s76 = sphi 0, %s73
      %s77 = sphi 0, %s76
      %s93 = sphi 0, %s77
    $region4: #{tpu_custom_call.1} parent=1 // loop_header_branch
      %22 = sbr.rel (%p20) target = $region8
    $region5: #{tpu_custom_call.1} parent=1 // loop_body
      %s24 = ssub.s32 %s19, 1
      %s25 = ssub.s32 %s19, 2
      %s32 = sadd.s32 1, %s27
      %p33 = scmp.ge.s32.totalorder %s32, 8
      %s34 = scalar_select %p33, 0, %s32
      %s35 = sadd.s32 1, %s26
      %s36 = scalar_select %p33, %s35, %s26
      %p37 = scmp.ge.s32.totalorder %s36, 2
      %s38 = scalar_select %p37, 0, %s36
      %s39 = smul.u32 %s26, 8
      %s40 = sadd.s32 %s39, %s27
      %s41 = sld [smem:[#allocation3 + %s40]]
      %s42 = smul.u32 %s38, 8
      %s43 = sadd.s32 %s42, %s34
      %s44 = sld [smem:[#allocation3 + %s43]]
      %s45 = ssub.s32 %s41, %s44
      %p46 = scmp.eq.s32.totalorder %s45, 0
      %s48 = sadd.s32 %s47, 1
      %s49 = scalar_select %p46, %s47, %s48
      %p52 = pneg %p46
      %p53 = scmp.eq.s32.totalorder %s19, 15
      %p54 = por %p52, %p53
      %p55 = scmp.ne.s32.totalorder %s47, %s50
      %p56 = scmp.eq.s32.totalorder %s19, 0
      %p57 = por %p55, %p56
      %p58 = scmp.ne.s32.totalorder %s47, %s50
      %p59 = scmp.eq.s32.totalorder %s24, 15
      %p60 = por %p58, %p59
      %p61 = scmp.ne.s32.totalorder %s50, %s51
      %p62 = scmp.eq.s32.totalorder %s24, 0
      %p63 = por %p61, %p62
      %p64 = scmp.ne.s32.totalorder %s50, %s51
      %p65 = scmp.eq.s32.totalorder %s25, 15
      %p66 = por %p64, %p65
      %p68 = scmp.ne.s32.totalorder %s51, %s67
      %p69 = scmp.eq.s32.totalorder %s25, 0
      %p70 = por %p68, %p69
      %s71 = ssub.s32 %s26, %s38
      %p72 = scmp.eq.s32.totalorder %s71, 0
      %s74 = sadd.s32 %s73, 1
      %s75 = scalar_select %p72, %s73, %s74
      %p78 = pneg %p72
      %p79 = scmp.eq.s32.totalorder %s19, 15
      %p80 = por %p78, %p79
      %p81 = scmp.ne.s32.totalorder %s73, %s76
      %p82 = scmp.eq.s32.totalorder %s19, 0
      %p83 = por %p81, %p82
      %p84 = scmp.ne.s32.totalorder %s73, %s76
      %p85 = scmp.eq.s32.totalorder %s24, 15
      %p86 = por %p84, %p85
      %p87 = scmp.ne.s32.totalorder %s76, %s77
      %p88 = scmp.eq.s32.totalorder %s24, 0
      %p89 = por %p87, %p88
      %p90 = scmp.ne.s32.totalorder %s76, %s77
      %p91 = scmp.eq.s32.totalorder %s25, 15
      %p92 = por %p90, %p91
      %p94 = scmp.ne.s32.totalorder %s77, %s93
      %p95 = scmp.eq.s32.totalorder %s25, 0
      %p96 = por %p94, %p95
      %p97 = scmp.le.s32.totalorder 1, %s19
      %p98 = scmp.lt.s32.totalorder %s19, 17
      %p99 = pnand %p97, %p98
      %p100 = pneg %p99
      // Predicated region
      $region9: #{tpu_custom_call.1} parent=5 // pred_check
        _
      $region10: #{tpu_custom_call.1} parent=5 // pred_check_branch
        %102 = sbr.rel (%p99) target = $region12
      $region11: #{tpu_custom_call.1} parent=5 // pred_region
        %s103 = ssub.s32 %s19, 1
      $region12: #{tpu_custom_call.1} parent=5 // pred_fallthru
        _
      %p104 = scmp.lt.s32.totalorder %s19, 16
      // Predicated region
      $region13: #{tpu_custom_call.1} parent=5 // pred_check
        %p105 = pneg %p104
      $region14: #{tpu_custom_call.1} parent=5 // pred_check_branch
        %107 = sbr.rel (%p105) target = $region16
      $region15: #{tpu_custom_call.1} parent=5 // pred_region
        // Predicated region
        $region17: #{tpu_custom_call.1} parent=15 // pred_check
          %p108 = pneg %p57
        $region18: #{tpu_custom_call.1} parent=15 // pred_check_branch
          %110 = sbr.rel (%p108) target = $region20
        $region19: #{tpu_custom_call.1} parent=15 // pred_region
          %s111 = smul.u32 %s26, 8
          %s112 = sadd.s32 %s111, %s27
          %s113 = sld [smem:[#allocation3 + %s112]]
          %p114 = scmp.lt.s32.totalorder %s113, 63
          %s115 = scalar_select %p114, %s113, 63
          %s116 = scalar_lea.vmem %s1, %s115
          %s117 = smul.u32 %s26, 8
          %s118 = sadd.s32 %s117, %s27
          %s119 = sld [smem:[#allocation3 + %s118]]
        $region20: #{tpu_custom_call.1} parent=15 // pred_fallthru
          _
      $region16: #{tpu_custom_call.1} parent=5 // pred_fallthru
        _
      %p120 = scmp.le.s32.totalorder 1, %s19
      %p121 = scmp.lt.s32.totalorder %s19, 17
      %p122 = pnand %p120, %p121
      %p123 = pneg %p122
      // Predicated region
      $region21: #{tpu_custom_call.1} parent=5 // pred_check
        _
      $region22: #{tpu_custom_call.1} parent=5 // pred_check_branch
        %125 = sbr.rel (%p122) target = $region24
      $region23: #{tpu_custom_call.1} parent=5 // pred_region
        %s126 = ssub.s32 %s19, 1
        %s127 = smul.u32 %s28, 8
        %s128 = sadd.s32 %s127, %s29
        %s129 = sld [smem:[#allocation3 + %s128]]
        %p130 = scmp.lt.s32.totalorder %s129, 63
        %s131 = scalar_select %p130, %s129, 63
        %s132 = scalar_lea.vmem %s1, %s131
        %p133 = pneg %p63
        %p134 = pneg %p60
        %p135 = pneg %p89
        %p136 = pneg %p86
        %s137 = sand.u32 %s76, 1
        %s138 = scalar_lea.sflag [#allocation5], %s137
        %s139 = sand.u32 %s76, 1
        %s140 = scalar_lea.vmem [#allocation4], %s139
        %s141 = smul.u32 %s28, 8
        %s142 = sadd.s32 %s141, %s29
        %s143 = sld [smem:[#allocation3 + %s142]]
        %p144 = scmp.lt.s32.totalorder %s143, 63
        %s145 = scalar_select %p144, %s143, 63
        %s146 = scalar_lea.vmem %s1, %s145
        %s147 = smul.u32 %s28, 8
        %s148 = sadd.s32 %s147, %s29
        %s149 = sld [smem:[#allocation3 + %s148]]
        %p150 = scmp.eq.s32.totalorder %s29, 0
        // Predicated region
        $region25: #{tpu_custom_call.1} parent=23 // pred_check
          %p151 = pneg %p150
        $region26: #{tpu_custom_call.1} parent=23 // pred_check_branch
          %153 = sbr.rel (%p151) target = $region28
        $region27: #{tpu_custom_call.1} parent=23 // pred_region
          %vm154 = vcmask 253952
          %155 = vst.msk [vmem:[%s140] sm:$0x1] %vm154, 0.0
        $region28: #{tpu_custom_call.1} parent=23 // pred_fallthru
          _
        %v156 = vld [vmem:[%s140] sm:$0x1]
        %v157 = vld [vmem:[%s146] sm:$0x1]
        %v158 = vadd.f32 %v156, %v157
        %vm159 = vcmask 253952
        %160 = vst.msk [vmem:[%s140] sm:$0x1] %vm159, %v158
        %p161 = scmp.eq.s32.totalorder %s29, 7
        // Predicated region
        $region29: #{tpu_custom_call.1} parent=23 // pred_check
          %p162 = pneg %p161
        $region30: #{tpu_custom_call.1} parent=23 // pred_check_branch
          %164 = sbr.rel (%p162) target = $region32
        $region31: #{tpu_custom_call.1} parent=23 // pred_region
          %v165 = vld [vmem:[%s140] sm:$0x1]
          %v166 = vmul.f32 %v165, 0.125
          %167 = vst.msk [vmem:[%s140] sm:$0x1] %vm159, %v166
        $region32: #{tpu_custom_call.1} parent=23 // pred_fallthru
          _
        %s168 = sand.u32 %s76, 1
        %s169 = scalar_lea.sflag [#allocation5], %s168
        %s170 = sand.u32 %s76, 1
        %s171 = scalar_lea.vmem [#allocation4], %s170
        // Predicated region
        $region33: #{tpu_custom_call.1} parent=23 // pred_check
          %p172 = pneg %p86
        $region34: #{tpu_custom_call.1} parent=23 // pred_check_branch
          %174 = sbr.rel (%p172) target = $region36
        $region35: #{tpu_custom_call.1} parent=23 // pred_region
          %176 = vsyncadd %s169, 0
          %s177 = scalar_lea.hbm %s2, %s28
          %s179 = sshll.u32 %s171, 4
          %s180 = int_to_ptr.vmem [resolvable:$true] %s179
          %s181 = sshll.u32 %s177, 4
          %s182 = int_to_ptr.hbm [resolvable:$true] %s181
          %184 = dma.vmem_to_hbm [thread:$0]  %s180, 16, %s182, %s169
        $region36: #{tpu_custom_call.1} parent=23 // pred_fallthru
          _
      $region24: #{tpu_custom_call.1} parent=5 // pred_fallthru
        _
      %p185 = scmp.le.s32.totalorder 2, %s19
      // Predicated region
      $region37: #{tpu_custom_call.1} parent=5 // pred_check
        %p186 = pneg %p185
      $region38: #{tpu_custom_call.1} parent=5 // pred_check_branch
        %188 = sbr.rel (%p186) target = $region40
      $region39: #{tpu_custom_call.1} parent=5 // pred_region
        %s189 = ssub.s32 %s19, 2
        // Predicated region
        $region41: #{tpu_custom_call.1} parent=39 // pred_check
          %p190 = pneg %p92
        $region42: #{tpu_custom_call.1} parent=39 // pred_check_branch
          %192 = sbr.rel (%p190) target = $region44
        $region43: #{tpu_custom_call.1} parent=39 // pred_region
          %s193 = sand.u32 %s77, 1
          %s194 = scalar_lea.sflag [#allocation5], %s193
          %s195 = sand.u32 %s77, 1
          %s196 = scalar_lea.vmem [#allocation4], %s195
          %198 = dma.done %s194, 16
        $region44: #{tpu_custom_call.1} parent=39 // pred_fallthru
          _
      $region40: #{tpu_custom_call.1} parent=5 // pred_fallthru
        _
    $region6: #{tpu_custom_call.1} parent=1 // loop_footer
      %s23 = sadd.s32 1, %s19
    $region7: #{tpu_custom_call.1} parent=1 // loop_footer_branch
      %18 = sbr.rel target = $region3
    $region8: #{tpu_custom_call.1} parent=1 // loop_exit
      _
    %199 = vsyncpa [#allocation5], 1
    %s200 = scalar_lea.sflag [#allocation5], 1
    %201 = vsyncpa %s200, 1

</llo_original>
